<compile_context>
chip_gen: v7x
topology: tpu7x:2x2x1
jax: 0.10.0
libtpu: 0.0.40
codegen_flags: <defaults>
</compile_context>

<pallas_src>
import functools
import math

import jax
import jax.numpy as jnp
from jax.experimental import pallas as pl
from jax.experimental.pallas import tpu as pltpu


# ----------------------------------------------------------------------------
# Stage 1: fused Q/K/V projection.  One (batch, seq-tile) per grid step.
# ----------------------------------------------------------------------------
def _qkv_proj_kernel(q_ref, k_ref, v_ref,
                     wq_ref, bq_ref, wk_ref, bk_ref, wv_ref, bv_ref,
                     qo_ref, ko_ref, vo_ref):
    """q/k/v_ref: (ts, E) bf16 tiles.  w*_ref: (E, E) bf16 ([in, out], scale
    pre-folded into wq).  b*_ref: (1, E) f32.  Outputs stored in bf16."""
    f32 = jnp.float32
    qo_ref[...] = (jnp.dot(q_ref[...], wq_ref[...], preferred_element_type=f32)
                   + bq_ref[...]).astype(qo_ref.dtype)
    ko_ref[...] = (jnp.dot(k_ref[...], wk_ref[...], preferred_element_type=f32)
                   + bk_ref[...]).astype(ko_ref.dtype)
    vo_ref[...] = (jnp.dot(v_ref[...], wv_ref[...], preferred_element_type=f32)
                   + bv_ref[...]).astype(vo_ref.dtype)


# ----------------------------------------------------------------------------
# Stage 2: flash attention (online softmax over K tiles) + fused out-proj.
# ----------------------------------------------------------------------------
def _attn_kernel(num_heads,
                 q_ref, k_ref, v_ref, wo_ref, bo_ref,
                 o_ref,
                 m_sc, l_sc, acc_sc):
    """One (batch, query-tile, key-tile) per grid step.

    q_ref        : (H, tq, hd) bf16 projected query tile (scale pre-folded)
    k_ref, v_ref : (H, tk, hd) bf16 projected key/value tile
    wo_ref       : (H, hd, E)  bf16 per-head output-projection weights
    bo_ref       : (1, E)      f32 bias
    o_ref        : (tq, E)     output tile (written on the last key tile)
    m/l/acc_sc   : f32 running max / denom / weighted-value accumulators
    """
    f32 = jnp.float32
    bf16 = jnp.bfloat16
    kj = pl.program_id(2)

    @pl.when(kj == 0)
    def _init():
        m_sc[...] = jnp.full(m_sc.shape, -jnp.inf, dtype=f32)
        l_sc[...] = jnp.zeros(l_sc.shape, dtype=f32)
        acc_sc[...] = jnp.zeros(acc_sc.shape, dtype=f32)

    # Heads-batched QK^T: (H, tq, hd) x (H, tk, hd) -> (H, tq, tk), f32 acc.
    s = jnp.einsum('hqd,hkd->hqk', q_ref[...], k_ref[...],
                   preferred_element_type=f32)

    # Online softmax update (all f32).
    m_prev = m_sc[...]
    m_new = jnp.maximum(m_prev, jnp.max(s, axis=-1, keepdims=True))
    alpha = jnp.exp(m_prev - m_new)
    p = jnp.exp(s - m_new)
    l_sc[...] = alpha * l_sc[...] + jnp.sum(p, axis=-1, keepdims=True)
    acc_sc[...] = alpha * acc_sc[...] + jnp.einsum(
        'hqk,hkd->hqd', p.astype(bf16), v_ref[...],
        preferred_element_type=f32)
    m_sc[...] = m_new

    @pl.when(kj == pl.num_programs(2) - 1)
    def _finalize():
        # Normalize (EUP reciprocal), cast once to bf16 for the MXU.
        ctx = (acc_sc[...] * pl.reciprocal(l_sc[...], approx=True)
               ).astype(bf16)                               # (H, tq, hd)
        # Output projection folded per head and accumulated into one
        # lane-dense (tq, E) f32 tile — no (H, tq, E) intermediate.
        out = jnp.dot(ctx[0], wo_ref[0], preferred_element_type=f32)
        for h in range(1, num_heads):
            out = out + jnp.dot(ctx[h], wo_ref[h], preferred_element_type=f32)
        o_ref[...] = (out + bo_ref[...]).astype(o_ref.dtype)


# ----------------------------------------------------------------------------
# Wrapper
# ----------------------------------------------------------------------------
def multi_head_attention(value, key, query, params, num_heads, *,
                         tile_p=256, tile_q=256, tile_k=256):
    """value/key/query: (N, S, E).  params: PyTorch-style Linear weights
    W (out, in) and biases b (out,).  Matches MultiHeadAttention.forward
    (mask is accepted by the PyTorch module but never applied -> ignored)."""
    N, S, E = query.shape
    assert E % num_heads == 0, "embed size must be divisible by num_heads"
    H = num_heads
    hd = E // H
    scale = 1.0 / math.sqrt(hd)

    ts_p = min(tile_p, S)
    ts_q = min(tile_q, S)
    ts_k = min(tile_k, S)
    assert S % ts_p == 0 and S % ts_q == 0 and S % ts_k == 0, \
        "seq length must be divisible by the tile sizes"
    nq, nk = S // ts_q, S // ts_k

    cdt = jnp.bfloat16
    f32 = jnp.float32
    out_dtype = query.dtype
    vmem_limit = 64 * 1024 * 1024  # raised from the scoped default; sweep per gen

    # Wrapper-side layout plumbing: [in, out] weights, bf16 MXU operands,
    # f32 biases, 1/sqrt(hd) folded into Wq *and* bq.
    wq_t = (params['wq'].T * scale).astype(cdt)          # (E, E)
    wk_t = params['wk'].T.astype(cdt)
    wv_t = params['wv'].T.astype(cdt)
    wo_h = params['wo'].T.reshape(H, hd, E).astype(cdt)  # per-head [in, out]
    bq = (params['bq'] * scale).reshape(1, E).astype(f32)
    bk = params['bk'].reshape(1, E).astype(f32)
    bv = params['bv'].reshape(1, E).astype(f32)
    bo = params['bo'].reshape(1, E).astype(f32)

    q = query.astype(cdt)
    k = key.astype(cdt)
    v = value.astype(cdt)

    # ---------------- Stage 1: Q/K/V projections ----------------
    x_spec = pl.BlockSpec((None, ts_p, E), lambda n, s: (n, s, 0))
    w_spec = pl.BlockSpec((E, E), lambda n, s: (0, 0))
    b_spec = pl.BlockSpec((1, E), lambda n, s: (0, 0))

    proj_flops = 2 * 3 * N * S * E * E
    proj_bytes = (3 * N * S * E * 2) * 2 + 3 * (E * E * 2 + E * 4)
    q_p, k_p, v_p = pl.pallas_call(
        _qkv_proj_kernel,
        out_shape=(jax.ShapeDtypeStruct((N, S, E), cdt),
                   jax.ShapeDtypeStruct((N, S, E), cdt),
                   jax.ShapeDtypeStruct((N, S, E), cdt)),
        grid_spec=pltpu.PrefetchScalarGridSpec(
            num_scalar_prefetch=0,
            grid=(N, S // ts_p),
            in_specs=[x_spec, x_spec, x_spec,
                      w_spec, b_spec, w_spec, b_spec, w_spec, b_spec],
            out_specs=[x_spec, x_spec, x_spec],
        ),
        compiler_params=pltpu.CompilerParams(
            dimension_semantics=("parallel", "parallel"),
            vmem_limit_bytes=vmem_limit,
        ),
        cost_estimate=pl.CostEstimate(flops=proj_flops, transcendentals=0,
                                      bytes_accessed=proj_bytes),
    )(q, k, v, wq_t, bq, wk_t, bk, wv_t, bv)

    # Head split (pure XLA layout plumbing): (N, S, E) -> (N, H, S, hd).
    def to_heads(x):
        return x.reshape(N, S, H, hd).transpose(0, 2, 1, 3)

    q_h, k_h, v_h = to_heads(q_p), to_heads(k_p), to_heads(v_p)

    # ---------------- Stage 2: flash attention + output projection ----------
    attn_flops = 4 * N * S * S * E + 2 * N * S * E * E
    attn_bytes = (N * S * E * 2                  # Q read once
                  + 2 * N * S * E * 2 * nq       # K/V re-read per query tile
                  + E * E * 2 + E * 4            # Wo + bo
                  + N * S * E * jnp.dtype(out_dtype).itemsize)
    out = pl.pallas_call(
        functools.partial(_attn_kernel, H),
        out_shape=jax.ShapeDtypeStruct((N, S, E), out_dtype),
        grid_spec=pltpu.PrefetchScalarGridSpec(
            num_scalar_prefetch=0,
            grid=(N, nq, nk),
            in_specs=[
                pl.BlockSpec((None, H, ts_q, hd), lambda n, qi, kj: (n, 0, qi, 0)),
                pl.BlockSpec((None, H, ts_k, hd), lambda n, qi, kj: (n, 0, kj, 0)),
                pl.BlockSpec((None, H, ts_k, hd), lambda n, qi, kj: (n, 0, kj, 0)),
                pl.BlockSpec((H, hd, E), lambda n, qi, kj: (0, 0, 0)),
                pl.BlockSpec((1, E), lambda n, qi, kj: (0, 0)),
            ],
            out_specs=pl.BlockSpec((None, ts_q, E), lambda n, qi, kj: (n, qi, 0)),
            scratch_shapes=[pltpu.VMEM((H, ts_q, 1), f32),    # running max
                            pltpu.VMEM((H, ts_q, 1), f32),    # running denom
                            pltpu.VMEM((H, ts_q, hd), f32)],  # running acc
        ),
        compiler_params=pltpu.CompilerParams(
            dimension_semantics=("parallel", "parallel", "arbitrary"),
            vmem_limit_bytes=vmem_limit,
        ),
        cost_estimate=pl.CostEstimate(flops=attn_flops,
                                      transcendentals=N * H * S * S,
                                      bytes_accessed=int(attn_bytes)),
    )(q_h, k_h, v_h, wo_h, bo)
    return out


# ----------------------------------------------------------------------------
# Pure-JAX f32 reference matching the PyTorch forward.
# ----------------------------------------------------------------------------
def _reference_mha(value, key, query, params, num_heads):
    N, S, E = query.shape
    hd = E // num_heads
    lin = lambda x, w, b: x @ w.T + b
    Q = lin(query, params['wq'], params['bq'])
    K = lin(key, params['wk'], params['bk'])
    V = lin(value, params['wv'], params['bv'])
    Q = Q.reshape(N, S, num_heads, hd).transpose(0, 2, 1, 3)
    K = K.reshape(N, S, num_heads, hd).transpose(0, 2, 1, 3)
    V = V.reshape(N, S, num_heads, hd).transpose(0, 2, 1, 3)
    scores = jnp.einsum('nhqd,nhkd->nhqk', Q, K) / math.sqrt(hd)
    attn = jax.nn.softmax(scores, axis=-1)
    out = jnp.einsum('nhqk,nhkd->nhqd', attn, V)
    out = out.transpose(0, 2, 1, 3).reshape(N, S, E)
    return lin(out, params['wo'], params['bo'])


if __name__ == "__main__":
    N, S, E, H = 2, 8, 32, 4

    root = jax.random.PRNGKey(0)
    keys = jax.random.split(root, 12)

    # PyTorch Linear shapes: W (out, in), b (out,).
    bound = 1.0 / math.sqrt(E)
    params = {
        'wq': jax.random.uniform(keys[0], (E, E), jnp.float32, -bound, bound),
        'bq': jax.random.uniform(keys[1], (E,), jnp.float32, -bound, bound),
        'wk': jax.random.uniform(keys[2], (E, E), jnp.float32, -bound, bound),
        'bk': jax.random.uniform(keys[3], (E,), jnp.float32, -bound, bound),
        'wv': jax.random.uniform(keys[4], (E, E), jnp.float32, -bound, bound),
        'bv': jax.random.uniform(keys[5], (E,), jnp.float32, -bound, bound),
        'wo': jax.random.uniform(keys[6], (E, E), jnp.float32, -bound, bound),
        'bo': jax.random.uniform(keys[7], (E,), jnp.float32, -bound, bound),
    }

    query = jax.random.normal(keys[8], (N, S, E), jnp.float32)
    key_in = jax.random.normal(keys[9], (N, S, E), jnp.float32)
    value = jax.random.normal(keys[10], (N, S, E), jnp.float32)

    out = multi_head_attention(value, key_in, query, params, H)
    out = jax.block_until_ready(out)

    ref = _reference_mha(value, key_in, query, params, H)
    assert out.shape == (N, S, E)
    # bf16 MXU operands + approx reciprocal -> loosened tolerance vs f32 ref.
    max_err = float(jnp.max(jnp.abs(out - ref)))
    assert jnp.allclose(out, ref, atol=5e-2, rtol=5e-2), \
        f"mismatch vs reference (max abs err {max_err})"

    print("KERNEL_OK")
</pallas_src>

<mosaic_0001>
module attributes {stable_mosaic.version = 11 : i64} {
  func.func @_qkv_proj_kernel(%arg0: i32, %arg1: i32, %arg2: memref<1x8x32xbf16, #tpu.memory_space<vmem>>, %arg3: memref<1x8x32xbf16, #tpu.memory_space<vmem>>, %arg4: memref<1x8x32xbf16, #tpu.memory_space<vmem>>, %arg5: memref<32x32xbf16, #tpu.memory_space<vmem>>, %arg6: memref<1x32xf32, #tpu.memory_space<vmem>>, %arg7: memref<32x32xbf16, #tpu.memory_space<vmem>>, %arg8: memref<1x32xf32, #tpu.memory_space<vmem>>, %arg9: memref<32x32xbf16, #tpu.memory_space<vmem>>, %arg10: memref<1x32xf32, #tpu.memory_space<vmem>>, %arg11: memref<1x8x32xbf16, #tpu.memory_space<vmem>>, %arg12: memref<1x8x32xbf16, #tpu.memory_space<vmem>>, %arg13: memref<1x8x32xbf16, #tpu.memory_space<vmem>>) attributes {dimension_semantics = [#tpu.dimension_semantics<parallel>, #tpu.dimension_semantics<parallel>], iteration_bounds = array<i64: 2, 1>, scalar_prefetch = 0 : i64, scratch_operands = 0 : i64, tpu.core_type = #tpu.core_type<tc>, window_params = [{transform_indices = @transform_0, window_bounds = array<i64: 1, 8, 32>}, {transform_indices = @transform_1, window_bounds = array<i64: 1, 8, 32>}, {transform_indices = @transform_2, window_bounds = array<i64: 1, 8, 32>}, {pipeline_mode = #tpu.pipeline_mode<synchronous>, transform_indices = @transform_3, window_bounds = array<i64: 32, 32>}, {pipeline_mode = #tpu.pipeline_mode<synchronous>, transform_indices = @transform_4, window_bounds = array<i64: 1, 32>}, {pipeline_mode = #tpu.pipeline_mode<synchronous>, transform_indices = @transform_5, window_bounds = array<i64: 32, 32>}, {pipeline_mode = #tpu.pipeline_mode<synchronous>, transform_indices = @transform_6, window_bounds = array<i64: 1, 32>}, {pipeline_mode = #tpu.pipeline_mode<synchronous>, transform_indices = @transform_7, window_bounds = array<i64: 32, 32>}, {pipeline_mode = #tpu.pipeline_mode<synchronous>, transform_indices = @transform_8, window_bounds = array<i64: 1, 32>}, {transform_indices = @transform_9, window_bounds = array<i64: 1, 8, 32>}, {transform_indices = @transform_10, window_bounds = array<i64: 1, 8, 32>}, {transform_indices = @transform_11, window_bounds = array<i64: 1, 8, 32>}]} {
    %c0 = arith.constant 0 : index
    %c0_0 = arith.constant 0 : index
    %c0_1 = arith.constant 0 : index
    %0 = vector.load %arg2[%c0, %c0_0, %c0_1] : memref<1x8x32xbf16, #tpu.memory_space<vmem>>, vector<1x8x32xbf16>
    %1 = vector.shape_cast %0 : vector<1x8x32xbf16> to vector<8x32xbf16>
    %c0_2 = arith.constant 0 : index
    %c0_3 = arith.constant 0 : index
    %2 = vector.load %arg5[%c0_2, %c0_3] : memref<32x32xbf16, #tpu.memory_space<vmem>>, vector<32x32xbf16>
    %cst = arith.constant dense<0.000000e+00> : vector<8x32xf32>
    %3 = tpu.matmul %1, %2, %cst {dimension_numbers = #tpu.dot_dimension_numbers<[1], [0], [0], [1], [0, 0, 1, 1], [], []>} : vector<8x32xbf16>, vector<32x32xbf16>, vector<8x32xf32> -> vector<8x32xf32>
    %c0_4 = arith.constant 0 : index
    %c0_5 = arith.constant 0 : index
    %4 = vector.load %arg6[%c0_4, %c0_5] : memref<1x32xf32, #tpu.memory_space<vmem>>, vector<1x32xf32>
    %5 = vector.broadcast %4 : vector<1x32xf32> to vector<8x32xf32>
    %6 = arith.addf %3, %5 : vector<8x32xf32>
    %7 = arith.truncf %6 : vector<8x32xf32> to vector<8x32xbf16>
    %c0_6 = arith.constant 0 : index
    %c0_7 = arith.constant 0 : index
    %c0_8 = arith.constant 0 : index
    %8 = vector.load %arg11[%c0_6, %c0_7, %c0_8] : memref<1x8x32xbf16, #tpu.memory_space<vmem>>, vector<1x8x32xbf16>
    %9 = vector.shape_cast %8 : vector<1x8x32xbf16> to vector<8x32xbf16>
    %10 = vector.shape_cast %7 : vector<8x32xbf16> to vector<1x8x32xbf16>
    tpu.vector_store %arg11[%c0_6, %c0_7, %c0_8], %10 {strides = array<i32>} : memref<1x8x32xbf16, #tpu.memory_space<vmem>>, vector<1x8x32xbf16>,
    %c0_9 = arith.constant 0 : index
    %c0_10 = arith.constant 0 : index
    %c0_11 = arith.constant 0 : index
    %11 = vector.load %arg3[%c0_9, %c0_10, %c0_11] : memref<1x8x32xbf16, #tpu.memory_space<vmem>>, vector<1x8x32xbf16>
    %12 = vector.shape_cast %11 : vector<1x8x32xbf16> to vector<8x32xbf16>
    %c0_12 = arith.constant 0 : index
    %c0_13 = arith.constant 0 : index
    %13 = vector.load %arg7[%c0_12, %c0_13] : memref<32x32xbf16, #tpu.memory_space<vmem>>, vector<32x32xbf16>
    %cst_14 = arith.constant dense<0.000000e+00> : vector<8x32xf32>
    %14 = tpu.matmul %12, %13, %cst_14 {dimension_numbers = #tpu.dot_dimension_numbers<[1], [0], [0], [1], [0, 0, 1, 1], [], []>} : vector<8x32xbf16>, vector<32x32xbf16>, vector<8x32xf32> -> vector<8x32xf32>
    %c0_15 = arith.constant 0 : index
    %c0_16 = arith.constant 0 : index
    %15 = vector.load %arg8[%c0_15, %c0_16] : memref<1x32xf32, #tpu.memory_space<vmem>>, vector<1x32xf32>
    %16 = vector.broadcast %15 : vector<1x32xf32> to vector<8x32xf32>
    %17 = arith.addf %14, %16 : vector<8x32xf32>
    %18 = arith.truncf %17 : vector<8x32xf32> to vector<8x32xbf16>
    %c0_17 = arith.constant 0 : index
    %c0_18 = arith.constant 0 : index
    %c0_19 = arith.constant 0 : index
    %19 = vector.load %arg12[%c0_17, %c0_18, %c0_19] : memref<1x8x32xbf16, #tpu.memory_space<vmem>>, vector<1x8x32xbf16>
    %20 = vector.shape_cast %19 : vector<1x8x32xbf16> to vector<8x32xbf16>
    %21 = vector.shape_cast %18 : vector<8x32xbf16> to vector<1x8x32xbf16>
    tpu.vector_store %arg12[%c0_17, %c0_18, %c0_19], %21 {strides = array<i32>} : memref<1x8x32xbf16, #tpu.memory_space<vmem>>, vector<1x8x32xbf16>,
    %c0_20 = arith.constant 0 : index
    %c0_21 = arith.constant 0 : index
    %c0_22 = arith.constant 0 : index
    %22 = vector.load %arg4[%c0_20, %c0_21, %c0_22] : memref<1x8x32xbf16, #tpu.memory_space<vmem>>, vector<1x8x32xbf16>
    %23 = vector.shape_cast %22 : vector<1x8x32xbf16> to vector<8x32xbf16>
    %c0_23 = arith.constant 0 : index
    %c0_24 = arith.constant 0 : index
    %24 = vector.load %arg9[%c0_23, %c0_24] : memref<32x32xbf16, #tpu.memory_space<vmem>>, vector<32x32xbf16>
    %cst_25 = arith.constant dense<0.000000e+00> : vector<8x32xf32>
    %25 = tpu.matmul %23, %24, %cst_25 {dimension_numbers = #tpu.dot_dimension_numbers<[1], [0], [0], [1], [0, 0, 1, 1], [], []>} : vector<8x32xbf16>, vector<32x32xbf16>, vector<8x32xf32> -> vector<8x32xf32>
    %c0_26 = arith.constant 0 : index
    %c0_27 = arith.constant 0 : index
    %26 = vector.load %arg10[%c0_26, %c0_27] : memref<1x32xf32, #tpu.memory_space<vmem>>, vector<1x32xf32>
    %27 = vector.broadcast %26 : vector<1x32xf32> to vector<8x32xf32>
    %28 = arith.addf %25, %27 : vector<8x32xf32>
    %29 = arith.truncf %28 : vector<8x32xf32> to vector<8x32xbf16>
    %c0_28 = arith.constant 0 : index
    %c0_29 = arith.constant 0 : index
    %c0_30 = arith.constant 0 : index
    %30 = vector.load %arg13[%c0_28, %c0_29, %c0_30] : memref<1x8x32xbf16, #tpu.memory_space<vmem>>, vector<1x8x32xbf16>
    %31 = vector.shape_cast %30 : vector<1x8x32xbf16> to vector<8x32xbf16>
    %32 = vector.shape_cast %29 : vector<8x32xbf16> to vector<1x8x32xbf16>
    tpu.vector_store %arg13[%c0_28, %c0_29, %c0_30], %32 {strides = array<i32>} : memref<1x8x32xbf16, #tpu.memory_space<vmem>>, vector<1x8x32xbf16>,
    return
  }
  func.func @transform_0(%arg0: i32, %arg1: i32) -> (i32, i32, i32) {
    %c0_i32 = arith.constant 0 : i32
    %c0_i32_0 = arith.constant 0 : i32
    return %arg0, %arg1, %c0_i32 : i32, i32, i32
  }
  func.func @transform_1(%arg0: i32, %arg1: i32) -> (i32, i32, i32) {
    %c0_i32 = arith.constant 0 : i32
    %c0_i32_0 = arith.constant 0 : i32
    return %arg0, %arg1, %c0_i32 : i32, i32, i32
  }
  func.func @transform_2(%arg0: i32, %arg1: i32) -> (i32, i32, i32) {
    %c0_i32 = arith.constant 0 : i32
    %c0_i32_0 = arith.constant 0 : i32
    return %arg0, %arg1, %c0_i32 : i32, i32, i32
  }
  func.func @transform_3(%arg0: i32, %arg1: i32) -> (i32, i32) {
    %c0_i32 = arith.constant 0 : i32
    %c0_i32_0 = arith.constant 0 : i32
    %c0_i32_1 = arith.constant 0 : i32
    return %c0_i32, %c0_i32_0 : i32, i32
  }
  func.func @transform_4(%arg0: i32, %arg1: i32) -> (i32, i32) {
    %c0_i32 = arith.constant 0 : i32
    %c0_i32_0 = arith.constant 0 : i32
    %c0_i32_1 = arith.constant 0 : i32
    return %c0_i32, %c0_i32_0 : i32, i32
  }
  func.func @transform_5(%arg0: i32, %arg1: i32) -> (i32, i32) {
    %c0_i32 = arith.constant 0 : i32
    %c0_i32_0 = arith.constant 0 : i32
    %c0_i32_1 = arith.constant 0 : i32
    return %c0_i32, %c0_i32_0 : i32, i32
  }
  func.func @transform_6(%arg0: i32, %arg1: i32) -> (i32, i32) {
    %c0_i32 = arith.constant 0 : i32
    %c0_i32_0 = arith.constant 0 : i32
    %c0_i32_1 = arith.constant 0 : i32
    return %c0_i32, %c0_i32_0 : i32, i32
  }
  func.func @transform_7(%arg0: i32, %arg1: i32) -> (i32, i32) {
    %c0_i32 = arith.constant 0 : i32
    %c0_i32_0 = arith.constant 0 : i32
    %c0_i32_1 = arith.constant 0 : i32
    return %c0_i32, %c0_i32_0 : i32, i32
  }
  func.func @transform_8(%arg0: i32, %arg1: i32) -> (i32, i32) {
    %c0_i32 = arith.constant 0 : i32
    %c0_i32_0 = arith.constant 0 : i32
    %c0_i32_1 = arith.constant 0 : i32
    return %c0_i32, %c0_i32_0 : i32, i32
  }
  func.func @transform_9(%arg0: i32, %arg1: i32) -> (i32, i32, i32) {
    %c0_i32 = arith.constant 0 : i32
    %c0_i32_0 = arith.constant 0 : i32
    return %arg0, %arg1, %c0_i32 : i32, i32, i32
  }
  func.func @transform_10(%arg0: i32, %arg1: i32) -> (i32, i32, i32) {
    %c0_i32 = arith.constant 0 : i32
    %c0_i32_0 = arith.constant 0 : i32
    return %arg0, %arg1, %c0_i32 : i32, i32, i32
  }
  func.func @transform_11(%arg0: i32, %arg1: i32) -> (i32, i32, i32) {
    %c0_i32 = arith.constant 0 : i32
    %c0_i32_0 = arith.constant 0 : i32
    return %arg0, %arg1, %c0_i32 : i32, i32, i32
  }
}

</mosaic_0001>

<llo_original>
// kernel: tpu_custom_call.1
$region0: #{tpu_custom_call.1}
  #allocation0 [shape = 'u32[]', space=smem, size = 0x4, offset = 0x4, fixed_abs, tag = 'smem constant byte address 0x4 - core index']
  #allocation1 [shape = 'u32[144,128]{1,0:T(1,128)}', space=vmem, size = 0x12000, scoped, tag = 'internal scratch']
  %s0 = inlined_call_operand.hbm [shape: bf16[2,8,32], index: 0, kind: input, shape index: {}]
  %s1 = inlined_call_operand.hbm [shape: bf16[2,8,32], index: 1, kind: input, shape index: {}]
  %s2 = inlined_call_operand.hbm [shape: bf16[2,8,32], index: 2, kind: input, shape index: {}]
  %s3 = inlined_call_operand.hbm [shape: bf16[32,32], index: 3, kind: input, shape index: {}]
  %s4 = inlined_call_operand.hbm [shape: f32[1,32], index: 4, kind: input, shape index: {}]
  %s5 = inlined_call_operand.hbm [shape: bf16[32,32], index: 5, kind: input, shape index: {}]
  %s6 = inlined_call_operand.hbm [shape: f32[1,32], index: 6, kind: input, shape index: {}]
  %s7 = inlined_call_operand.hbm [shape: bf16[32,32], index: 7, kind: input, shape index: {}]
  %s8 = inlined_call_operand.hbm [shape: f32[1,32], index: 8, kind: input, shape index: {}]
  %s9 = inlined_call_operand.hbm [shape: bf16[2,8,32], index: 9, kind: output, shape index: {0}]
  %s10 = inlined_call_operand.hbm [shape: bf16[2,8,32], index: 10, kind: output, shape index: {1}]
  %s11 = inlined_call_operand.hbm [shape: bf16[2,8,32], index: 11, kind: output, shape index: {2}]
  %12 = xla_tuple %s9, %s10, %s11
  %s13 = sld [smem:[#allocation0]]
  $region121: #{tpu_custom_call.1} parent=0
    _
  %s15 = ssub.s32 1, %s13
  %s16 = scalar_select 0, %s15, %s13
  $region1: #{tpu_custom_call.1} parent=0
    #allocation2 [shape = 'u8[4096]{0}', space=vmem, size = 0x1000, scoped, tag = 'input window, operand 0']
    #allocation3 [shape = 's32[2]{0}', space=sflag, size = 0x8, scoped, tag = 'scoped memory for tpu_custom_call.1']
    #allocation4 [shape = 's32[2]{0}', space=sflag, size = 0x8, scoped, tag = 'scoped memory for tpu_custom_call.1']
    #allocation5 [shape = 'u8[4096]{0}', space=vmem, size = 0x1000, scoped, tag = 'input window, operand 1']
    #allocation6 [shape = 's32[2]{0}', space=sflag, size = 0x8, scoped, tag = 'scoped memory for tpu_custom_call.1']
    #allocation7 [shape = 'u8[4096]{0}', space=vmem, size = 0x1000, scoped, tag = 'input window, operand 2']
    #allocation8 [shape = 'u8[8192]{0}', space=vmem, size = 0x2000, scoped, tag = 'input window, operand 3, single buffered']
    #allocation9 [shape = 's32[1]{0}', space=sflag, size = 0x4, scoped, tag = 'scoped memory for tpu_custom_call.1']
    #allocation10 [shape = 'u8[512]{0}', space=vmem, size = 0x400, scoped, tag = 'input window, operand 4, single buffered']
    #allocation11 [shape = 'u8[8192]{0}', space=vmem, size = 0x2000, scoped, tag = 'input window, operand 5, single buffered']
    #allocation12 [shape = 's32[1]{0}', space=sflag, size = 0x4, scoped, tag = 'scoped memory for tpu_custom_call.1']
    #allocation13 [shape = 'u8[512]{0}', space=vmem, size = 0x400, scoped, tag = 'input window, operand 6, single buffered']
    #allocation14 [shape = 'u8[8192]{0}', space=vmem, size = 0x2000, scoped, tag = 'input window, operand 7, single buffered']
    #allocation15 [shape = 's32[1]{0}', space=sflag, size = 0x4, scoped, tag = 'scoped memory for tpu_custom_call.1']
    #allocation16 [shape = 'u8[512]{0}', space=vmem, size = 0x400, scoped, tag = 'input window, operand 8, single buffered']
    #allocation17 [shape = 'u8[4096]{0}', space=vmem, size = 0x1000, scoped, tag = 'output window, operand 0']
    #allocation18 [shape = 'u8[4096]{0}', space=vmem, size = 0x1000, scoped, tag = 'output window, operand 1']
    #allocation19 [shape = 's32[2]{0}', space=sflag, size = 0x8, scoped, tag = 'scoped memory for tpu_custom_call.1']
    #allocation20 [shape = 'u8[4096]{0}', space=vmem, size = 0x1000, scoped, tag = 'output window, operand 2']
    %17 = vsyncpa [#allocation3], 0
    %s18 = scalar_lea.sflag [#allocation3], 1
    %19 = vsyncpa %s18, 0
    %20 = vsyncpa [#allocation6], 0
    %s21 = scalar_lea.sflag [#allocation6], 1
    %22 = vsyncpa %s21, 0
    %23 = vsyncpa [#allocation9], 0
    %24 = vsyncpa [#allocation12], 0
    %25 = vsyncpa [#allocation15], 0
    %26 = vsyncpa [#allocation4], 0
    %s27 = scalar_lea.sflag [#allocation4], 1
    %28 = vsyncpa %s27, 0
    %29 = vsyncpa [#allocation19], 0
    %s30 = scalar_lea.sflag [#allocation19], 1
    %31 = vsyncpa %s30, 0
    loop: start=0, step=1, limit=4
    $region2: #{tpu_custom_call.1} parent=1 // loop_pre_header
      _
    $region3: #{tpu_custom_call.1} parent=1 // loop_header
      %s33 = sphi 0, %s37
      %p34 = scmp.ge.s32.totalorder %s33, 4
      %s40 = sphi 0, %s52
      %s41 = sphi 0, %s48
      %s42 = sphi 0, %s40
      %s43 = sphi 0, %s41
      %s44 = sphi 0, %s42
      %s45 = sphi 0, %s43
      %s57 = sphi 0, %s59
      %s60 = sphi 0, %s57
      %s61 = sphi 0, %s60
      %s77 = sphi 0, %s61
      %s85 = sphi 0, %s87
      %s88 = sphi 0, %s85
      %s89 = sphi 0, %s88
      %s105 = sphi 0, %s89
      %s113 = sphi 0, %s115
      %s116 = sphi 0, %s113
      %s117 = sphi 0, %s116
      %s133 = sphi 0, %s117
      %s137 = sphi 0, %s137
      %s139 = sphi 0, %s137
      %s140 = sphi 0, %s139
      %s154 = sphi 0, %s140
      %s158 = sphi 0, %s158
      %s160 = sphi 0, %s158
      %s161 = sphi 0, %s160
      %s175 = sphi 0, %s161
      %s179 = sphi 0, %s179
      %s181 = sphi 0, %s179
      %s182 = sphi 0, %s181
      %s196 = sphi 0, %s182
      %s200 = sphi 0, %s200
      %s202 = sphi 0, %s200
      %s203 = sphi 0, %s202
      %s217 = sphi 0, %s203
      %s221 = sphi 0, %s221
      %s223 = sphi 0, %s221
      %s224 = sphi 0, %s223
      %s238 = sphi 0, %s224
      %s242 = sphi 0, %s242
      %s244 = sphi 0, %s242
      %s245 = sphi 0, %s244
      %s259 = sphi 0, %s245
      %s267 = sphi 0, %s269
      %s270 = sphi 0, %s267
      %s271 = sphi 0, %s270
      %s287 = sphi 0, %s271
      %s295 = sphi 0, %s297
      %s298 = sphi 0, %s295
      %s299 = sphi 0, %s298
      %s315 = sphi 0, %s299
      %s323 = sphi 0, %s325
      %s326 = sphi 0, %s323
      %s327 = sphi 0, %s326
      %s343 = sphi 0, %s327
    $region4: #{tpu_custom_call.1} parent=1 // loop_header_branch
      %36 = sbr.rel (%p34) target = $region8
    $region5: #{tpu_custom_call.1} parent=1 // loop_body
      %s38 = ssub.s32 %s33, 1
      %s39 = ssub.s32 %s33, 2
      %s46 = sadd.s32 1, %s41
      %p47 = scmp.ge.s32.totalorder %s46, 1
      %s48 = scalar_select %p47, 0, %s46
      %s49 = sadd.s32 1, %s40
      %s50 = scalar_select %p47, %s49, %s40
      %p51 = scmp.ge.s32.totalorder %s50, 2
      %s52 = scalar_select %p51, 0, %s50
      %s53 = ssub.s32 %s40, %s52
      %s54 = ssub.s32 %s41, %s48
      %s55 = sor.u32 %s53, %s54
      %p56 = scmp.eq.s32.totalorder %s55, 0
      %s58 = sadd.s32 %s57, 1
      %s59 = scalar_select %p56, %s57, %s58
      %p62 = pneg %p56
      %p63 = scmp.eq.s32.totalorder %s33, 1
      %p64 = por %p62, %p63
      %p65 = scmp.ne.s32.totalorder %s57, %s60
      %p66 = scmp.eq.s32.totalorder %s33, 0
      %p67 = por %p65, %p66
      %p68 = scmp.ne.s32.totalorder %s57, %s60
      %p69 = scmp.eq.s32.totalorder %s38, 1
      %p70 = por %p68, %p69
      %p71 = scmp.ne.s32.totalorder %s60, %s61
      %p72 = scmp.eq.s32.totalorder %s38, 0
      %p73 = por %p71, %p72
      %p74 = scmp.ne.s32.totalorder %s60, %s61
      %p75 = scmp.eq.s32.totalorder %s39, 1
      %p76 = por %p74, %p75
      %p78 = scmp.ne.s32.totalorder %s61, %s77
      %p79 = scmp.eq.s32.totalorder %s39, 0
      %p80 = por %p78, %p79
      %s81 = ssub.s32 %s40, %s52
      %s82 = ssub.s32 %s41, %s48
      %s83 = sor.u32 %s81, %s82
      %p84 = scmp.eq.s32.totalorder %s83, 0
      %s86 = sadd.s32 %s85, 1
      %s87 = scalar_select %p84, %s85, %s86
      %p90 = pneg %p84
      %p91 = scmp.eq.s32.totalorder %s33, 1
      %p92 = por %p90, %p91
      %p93 = scmp.ne.s32.totalorder %s85, %s88
      %p94 = scmp.eq.s32.totalorder %s33, 0
      %p95 = por %p93, %p94
      %p96 = scmp.ne.s32.totalorder %s85, %s88
      %p97 = scmp.eq.s32.totalorder %s38, 1
      %p98 = por %p96, %p97
      %p99 = scmp.ne.s32.totalorder %s88, %s89
      %p100 = scmp.eq.s32.totalorder %s38, 0
      %p101 = por %p99, %p100
      %p102 = scmp.ne.s32.totalorder %s88, %s89
      %p103 = scmp.eq.s32.totalorder %s39, 1
      %p104 = por %p102, %p103
      %p106 = scmp.ne.s32.totalorder %s89, %s105
      %p107 = scmp.eq.s32.totalorder %s39, 0
      %p108 = por %p106, %p107
      %s109 = ssub.s32 %s40, %s52
      %s110 = ssub.s32 %s41, %s48
      %s111 = sor.u32 %s109, %s110
      %p112 = scmp.eq.s32.totalorder %s111, 0
      %s114 = sadd.s32 %s113, 1
      %s115 = scalar_select %p112, %s113, %s114
      %p118 = pneg %p112
      %p119 = scmp.eq.s32.totalorder %s33, 1
      %p120 = por %p118, %p119
      %p121 = scmp.ne.s32.totalorder %s113, %s116
      %p122 = scmp.eq.s32.totalorder %s33, 0
      %p123 = por %p121, %p122
      %p124 = scmp.ne.s32.totalorder %s113, %s116
      %p125 = scmp.eq.s32.totalorder %s38, 1
      %p126 = por %p124, %p125
      %p127 = scmp.ne.s32.totalorder %s116, %s117
      %p128 = scmp.eq.s32.totalorder %s38, 0
      %p129 = por %p127, %p128
      %p130 = scmp.ne.s32.totalorder %s116, %s117
      %p131 = scmp.eq.s32.totalorder %s39, 1
      %p132 = por %p130, %p131
      %p134 = scmp.ne.s32.totalorder %s117, %s133
      %p135 = scmp.eq.s32.totalorder %s39, 0
      %p136 = por %p134, %p135
      %s138 = sadd.s32 %s137, 1
      %p141 = scmp.eq.s32.totalorder %s33, 1
      %p142 = scmp.ne.s32.totalorder %s137, %s139
      %p143 = scmp.eq.s32.totalorder %s33, 0
      %p144 = por %p142, %p143
      %p145 = scmp.ne.s32.totalorder %s137, %s139
      %p146 = scmp.eq.s32.totalorder %s38, 1
      %p147 = por %p145, %p146
      %p148 = scmp.ne.s32.totalorder %s139, %s140
      %p149 = scmp.eq.s32.totalorder %s38, 0
      %p150 = por %p148, %p149
      %p151 = scmp.ne.s32.totalorder %s139, %s140
      %p152 = scmp.eq.s32.totalorder %s39, 1
      %p153 = por %p151, %p152
      %p155 = scmp.ne.s32.totalorder %s140, %s154
      %p156 = scmp.eq.s32.totalorder %s39, 0
      %p157 = por %p155, %p156
      %s159 = sadd.s32 %s158, 1
      %p162 = scmp.eq.s32.totalorder %s33, 1
      %p163 = scmp.ne.s32.totalorder %s158, %s160
      %p164 = scmp.eq.s32.totalorder %s33, 0
      %p165 = por %p163, %p164
      %p166 = scmp.ne.s32.totalorder %s158, %s160
      %p167 = scmp.eq.s32.totalorder %s38, 1
      %p168 = por %p166, %p167
      %p169 = scmp.ne.s32.totalorder %s160, %s161
      %p170 = scmp.eq.s32.totalorder %s38, 0
      %p171 = por %p169, %p170
      %p172 = scmp.ne.s32.totalorder %s160, %s161
      %p173 = scmp.eq.s32.totalorder %s39, 1
      %p174 = por %p172, %p173
      %p176 = scmp.ne.s32.totalorder %s161, %s175
      %p177 = scmp.eq.s32.totalorder %s39, 0
      %p178 = por %p176, %p177
      %s180 = sadd.s32 %s179, 1
      %p183 = scmp.eq.s32.totalorder %s33, 1
      %p184 = scmp.ne.s32.totalorder %s179, %s181
      %p185 = scmp.eq.s32.totalorder %s33, 0
      %p186 = por %p184, %p185
      %p187 = scmp.ne.s32.totalorder %s179, %s181
      %p188 = scmp.eq.s32.totalorder %s38, 1
      %p189 = por %p187, %p188
      %p190 = scmp.ne.s32.totalorder %s181, %s182
      %p191 = scmp.eq.s32.totalorder %s38, 0
      %p192 = por %p190, %p191
      %p193 = scmp.ne.s32.totalorder %s181, %s182
      %p194 = scmp.eq.s32.totalorder %s39, 1
      %p195 = por %p193, %p194
      %p197 = scmp.ne.s32.totalorder %s182, %s196
      %p198 = scmp.eq.s32.totalorder %s39, 0
      %p199 = por %p197, %p198
      %s201 = sadd.s32 %s200, 1
      %p204 = scmp.eq.s32.totalorder %s33, 1
      %p205 = scmp.ne.s32.totalorder %s200, %s202
      %p206 = scmp.eq.s32.totalorder %s33, 0
      %p207 = por %p205, %p206
      %p208 = scmp.ne.s32.totalorder %s200, %s202
      %p209 = scmp.eq.s32.totalorder %s38, 1
      %p210 = por %p208, %p209
      %p211 = scmp.ne.s32.totalorder %s202, %s203
      %p212 = scmp.eq.s32.totalorder %s38, 0
      %p213 = por %p211, %p212
      %p214 = scmp.ne.s32.totalorder %s202, %s203
      %p215 = scmp.eq.s32.totalorder %s39, 1
      %p216 = por %p214, %p215
      %p218 = scmp.ne.s32.totalorder %s203, %s217
      %p219 = scmp.eq.s32.totalorder %s39, 0
      %p220 = por %p218, %p219
      %s222 = sadd.s32 %s221, 1
      %p225 = scmp.eq.s32.totalorder %s33, 1
      %p226 = scmp.ne.s32.totalorder %s221, %s223
      %p227 = scmp.eq.s32.totalorder %s33, 0
      %p228 = por %p226, %p227
      %p229 = scmp.ne.s32.totalorder %s221, %s223
      %p230 = scmp.eq.s32.totalorder %s38, 1
      %p231 = por %p229, %p230
      %p232 = scmp.ne.s32.totalorder %s223, %s224
      %p233 = scmp.eq.s32.totalorder %s38, 0
      %p234 = por %p232, %p233
      %p235 = scmp.ne.s32.totalorder %s223, %s224
      %p236 = scmp.eq.s32.totalorder %s39, 1
      %p237 = por %p235, %p236
      %p239 = scmp.ne.s32.totalorder %s224, %s238
      %p240 = scmp.eq.s32.totalorder %s39, 0
      %p241 = por %p239, %p240
      %s243 = sadd.s32 %s242, 1
      %p246 = scmp.eq.s32.totalorder %s33, 1
      %p247 = scmp.ne.s32.totalorder %s242, %s244
      %p248 = scmp.eq.s32.totalorder %s33, 0
      %p249 = por %p247, %p248
      %p250 = scmp.ne.s32.totalorder %s242, %s244
      %p251 = scmp.eq.s32.totalorder %s38, 1
      %p252 = por %p250, %p251
      %p253 = scmp.ne.s32.totalorder %s244, %s245
      %p254 = scmp.eq.s32.totalorder %s38, 0
      %p255 = por %p253, %p254
      %p256 = scmp.ne.s32.totalorder %s244, %s245
      %p257 = scmp.eq.s32.totalorder %s39, 1
      %p258 = por %p256, %p257
      %p260 = scmp.ne.s32.totalorder %s245, %s259
      %p261 = scmp.eq.s32.totalorder %s39, 0
      %p262 = por %p260, %p261
      %s263 = ssub.s32 %s40, %s52
      %s264 = ssub.s32 %s41, %s48
      %s265 = sor.u32 %s263, %s264
      %p266 = scmp.eq.s32.totalorder %s265, 0
      %s268 = sadd.s32 %s267, 1
      %s269 = scalar_select %p266, %s267, %s268
      %p272 = pneg %p266
      %p273 = scmp.eq.s32.totalorder %s33, 1
      %p274 = por %p272, %p273
      %p275 = scmp.ne.s32.totalorder %s267, %s270
      %p276 = scmp.eq.s32.totalorder %s33, 0
      %p277 = por %p275, %p276
      %p278 = scmp.ne.s32.totalorder %s267, %s270
      %p279 = scmp.eq.s32.totalorder %s38, 1
      %p280 = por %p278, %p279
      %p281 = scmp.ne.s32.totalorder %s270, %s271
      %p282 = scmp.eq.s32.totalorder %s38, 0
      %p283 = por %p281, %p282
      %p284 = scmp.ne.s32.totalorder %s270, %s271
      %p285 = scmp.eq.s32.totalorder %s39, 1
      %p286 = por %p284, %p285
      %p288 = scmp.ne.s32.totalorder %s271, %s287
      %p289 = scmp.eq.s32.totalorder %s39, 0
      %p290 = por %p288, %p289
      %s291 = ssub.s32 %s40, %s52
      %s292 = ssub.s32 %s41, %s48
      %s293 = sor.u32 %s291, %s292
      %p294 = scmp.eq.s32.totalorder %s293, 0
      %s296 = sadd.s32 %s295, 1
      %s297 = scalar_select %p294, %s295, %s296
      %p300 = pneg %p294
      %p301 = scmp.eq.s32.totalorder %s33, 1
      %p302 = por %p300, %p301
      %p303 = scmp.ne.s32.totalorder %s295, %s298
      %p304 = scmp.eq.s32.totalorder %s33, 0
      %p305 = por %p303, %p304
      %p306 = scmp.ne.s32.totalorder %s295, %s298
      %p307 = scmp.eq.s32.totalorder %s38, 1
      %p308 = por %p306, %p307
      %p309 = scmp.ne.s32.totalorder %s298, %s299
      %p310 = scmp.eq.s32.totalorder %s38, 0
      %p311 = por %p309, %p310
      %p312 = scmp.ne.s32.totalorder %s298, %s299
      %p313 = scmp.eq.s32.totalorder %s39, 1
      %p314 = por %p312, %p313
      %p316 = scmp.ne.s32.totalorder %s299, %s315
      %p317 = scmp.eq.s32.totalorder %s39, 0
      %p318 = por %p316, %p317
      %s319 = ssub.s32 %s40, %s52
      %s320 = ssub.s32 %s41, %s48
      %s321 = sor.u32 %s319, %s320
      %p322 = scmp.eq.s32.totalorder %s321, 0
      %s324 = sadd.s32 %s323, 1
      %s325 = scalar_select %p322, %s323, %s324
      %p328 = pneg %p322
      %p329 = scmp.eq.s32.totalorder %s33, 1
      %p330 = por %p328, %p329
      %p331 = scmp.ne.s32.totalorder %s323, %s326
      %p332 = scmp.eq.s32.totalorder %s33, 0
      %p333 = por %p331, %p332
      %p334 = scmp.ne.s32.totalorder %s323, %s326
      %p335 = scmp.eq.s32.totalorder %s38, 1
      %p336 = por %p334, %p335
      %p337 = scmp.ne.s32.totalorder %s326, %s327
      %p338 = scmp.eq.s32.totalorder %s38, 0
      %p339 = por %p337, %p338
      %p340 = scmp.ne.s32.totalorder %s326, %s327
      %p341 = scmp.eq.s32.totalorder %s39, 1
      %p342 = por %p340, %p341
      %p344 = scmp.ne.s32.totalorder %s327, %s343
      %p345 = scmp.eq.s32.totalorder %s39, 0
      %p346 = por %p344, %p345
      %p347 = scmp.le.s32.totalorder 1, %s33
      %p348 = scmp.lt.s32.totalorder %s33, 3
      %p349 = pnand %p347, %p348
      %p350 = pneg %p349
      // Predicated region
      $region9: #{tpu_custom_call.1} parent=5 // pred_check
        _
      $region10: #{tpu_custom_call.1} parent=5 // pred_check_branch
        %352 = sbr.rel (%p349) target = $region12
      $region11: #{tpu_custom_call.1} parent=5 // pred_region
        %s353 = ssub.s32 %s33, 1
        // Predicated region
        $region13: #{tpu_custom_call.1} parent=11 // pred_check
          %p354 = pneg %p150
        $region14: #{tpu_custom_call.1} parent=11 // pred_check_branch
          %356 = sbr.rel (%p354) target = $region16
        $region15: #{tpu_custom_call.1} parent=11 // pred_region
          %s358 = ssub.s32 256, 256
          %359 = vsyncadd [#allocation9], %s358
          %s360 = sshll.u32 [#allocation8], 4
          %s361 = int_to_ptr.vmem [resolvable:$true] %s360
          %366 = dma.hbm_to_vmem [thread:$0]  %s3, 256, %s361, [#allocation9], 64, 64, 4
        $region16: #{tpu_custom_call.1} parent=11 // pred_fallthru
          _
        // Predicated region
        $region17: #{tpu_custom_call.1} parent=11 // pred_check
          %p367 = pneg %p171
        $region18: #{tpu_custom_call.1} parent=11 // pred_check_branch
          %369 = sbr.rel (%p367) target = $region20
        $region19: #{tpu_custom_call.1} parent=11 // pred_region
          %s371 = ssub.s32 16, 16
          %372 = vsyncadd [#allocation9], %s371
          %s374 = sshll.u32 [#allocation10], 4
          %s375 = int_to_ptr.vmem [resolvable:$true] %s374
          %377 = dma.hbm_to_vmem [thread:$0]  %s4, 16, %s375, [#allocation9]
        $region20: #{tpu_custom_call.1} parent=11 // pred_fallthru
          _
        // Predicated region
        $region21: #{tpu_custom_call.1} parent=11 // pred_check
          %p378 = pneg %p192
        $region22: #{tpu_custom_call.1} parent=11 // pred_check_branch
          %380 = sbr.rel (%p378) target = $region24
        $region23: #{tpu_custom_call.1} parent=11 // pred_region
          %s382 = ssub.s32 256, 256
          %383 = vsyncadd [#allocation12], %s382
          %s384 = sshll.u32 [#allocation11], 4
          %s385 = int_to_ptr.vmem [resolvable:$true] %s384
          %390 = dma.hbm_to_vmem [thread:$0]  %s5, 256, %s385, [#allocation12], 64, 64, 4
        $region24: #{tpu_custom_call.1} parent=11 // pred_fallthru
          _
        // Predicated region
        $region25: #{tpu_custom_call.1} parent=11 // pred_check
          %p391 = pneg %p213
        $region26: #{tpu_custom_call.1} parent=11 // pred_check_branch
          %393 = sbr.rel (%p391) target = $region28
        $region27: #{tpu_custom_call.1} parent=11 // pred_region
          %s395 = ssub.s32 16, 16
          %396 = vsyncadd [#allocation12], %s395
          %s398 = sshll.u32 [#allocation13], 4
          %s399 = int_to_ptr.vmem [resolvable:$true] %s398
          %401 = dma.hbm_to_vmem [thread:$0]  %s6, 16, %s399, [#allocation12]
        $region28: #{tpu_custom_call.1} parent=11 // pred_fallthru
          _
        // Predicated region
        $region29: #{tpu_custom_call.1} parent=11 // pred_check
          %p402 = pneg %p234
        $region30: #{tpu_custom_call.1} parent=11 // pred_check_branch
          %404 = sbr.rel (%p402) target = $region32
        $region31: #{tpu_custom_call.1} parent=11 // pred_region
          %s406 = ssub.s32 256, 256
          %407 = vsyncadd [#allocation15], %s406
          %s408 = sshll.u32 [#allocation14], 4
          %s409 = int_to_ptr.vmem [resolvable:$true] %s408
          %414 = dma.hbm_to_vmem [thread:$0]  %s7, 256, %s409, [#allocation15], 64, 64, 4
        $region32: #{tpu_custom_call.1} parent=11 // pred_fallthru
          _
        // Predicated region
        $region33: #{tpu_custom_call.1} parent=11 // pred_check
          %p415 = pneg %p255
        $region34: #{tpu_custom_call.1} parent=11 // pred_check_branch
          %417 = sbr.rel (%p415) target = $region36
        $region35: #{tpu_custom_call.1} parent=11 // pred_region
          %s419 = ssub.s32 16, 16
          %420 = vsyncadd [#allocation15], %s419
          %s422 = sshll.u32 [#allocation16], 4
          %s423 = int_to_ptr.vmem [resolvable:$true] %s422
          %425 = dma.hbm_to_vmem [thread:$0]  %s8, 16, %s423, [#allocation15]
        $region36: #{tpu_custom_call.1} parent=11 // pred_fallthru
          _
      $region12: #{tpu_custom_call.1} parent=5 // pred_fallthru
        _
      %p426 = scmp.lt.s32.totalorder %s33, 2
      // Predicated region
      $region37: #{tpu_custom_call.1} parent=5 // pred_check
        %p427 = pneg %p426
      $region38: #{tpu_custom_call.1} parent=5 // pred_check_branch
        %429 = sbr.rel (%p427) target = $region40
      $region39: #{tpu_custom_call.1} parent=5 // pred_region
        // Predicated region
        $region41: #{tpu_custom_call.1} parent=39 // pred_check
          %p430 = pneg %p67
        $region42: #{tpu_custom_call.1} parent=39 // pred_check_branch
          %432 = sbr.rel (%p430) target = $region44
        $region43: #{tpu_custom_call.1} parent=39 // pred_region
          %s433 = sand.u32 %s57, 1
          %s434 = scalar_lea.sflag [#allocation3], %s433
          %s435 = sand.u32 %s57, 1
          %s436 = smul.addr %s435, 4
          %s437 = scalar_lea.vmem [#allocation2], %s436
          %s439 = ssub.s32 64, 64
          %440 = vsyncadd %s434, %s439
          %s441 = sadd.s32 %s41, %s40
          %s442 = smul.addr %s441, 64
          %s443 = scalar_lea.hbm %s0, %s442
          %s445 = sshll.u32 %s437, 4
          %s446 = int_to_ptr.vmem [resolvable:$true] %s445
          %448 = dma.hbm_to_vmem [thread:$0]  %s443, 64, %s446, %s434
        $region44: #{tpu_custom_call.1} parent=39 // pred_fallthru
          _
        // Predicated region
        $region45: #{tpu_custom_call.1} parent=39 // pred_check
          %p449 = pneg %p95
        $region46: #{tpu_custom_call.1} parent=39 // pred_check_branch
          %451 = sbr.rel (%p449) target = $region48
        $region47: #{tpu_custom_call.1} parent=39 // pred_region
          %s452 = sand.u32 %s33, 1
          %s453 = scalar_lea.sflag [#allocation6], %s452
          %s454 = sand.u32 %s85, 1
          %s455 = smul.addr %s454, 4
          %s456 = scalar_lea.vmem [#allocation5], %s455
          %s458 = ssub.s32 64, 64
          %459 = vsyncadd %s453, %s458
          %s460 = sadd.s32 %s41, %s40
          %s461 = smul.addr %s460, 64
          %s462 = scalar_lea.hbm %s1, %s461
          %s464 = sshll.u32 %s456, 4
          %s465 = int_to_ptr.vmem [resolvable:$true] %s464
          %467 = dma.hbm_to_vmem [thread:$0]  %s462, 64, %s465, %s453
        $region48: #{tpu_custom_call.1} parent=39 // pred_fallthru
          _
        // Predicated region
        $region49: #{tpu_custom_call.1} parent=39 // pred_check
          %p468 = pneg %p123
        $region50: #{tpu_custom_call.1} parent=39 // pred_check_branch
          %470 = sbr.rel (%p468) target = $region52
        $region51: #{tpu_custom_call.1} parent=39 // pred_region
          %s471 = sand.u32 %s33, 1
          %s472 = scalar_lea.sflag [#allocation6], %s471
          %s473 = sand.u32 %s113, 1
          %s474 = smul.addr %s473, 4
          %s475 = scalar_lea.vmem [#allocation7], %s474
          %s477 = ssub.s32 64, 64
          %478 = vsyncadd %s472, %s477
          %s479 = sadd.s32 %s41, %s40
          %s480 = smul.addr %s479, 64
          %s481 = scalar_lea.hbm %s2, %s480
          %s483 = sshll.u32 %s475, 4
          %s484 = int_to_ptr.vmem [resolvable:$true] %s483
          %486 = dma.hbm_to_vmem [thread:$0]  %s481, 64, %s484, %s472
        $region52: #{tpu_custom_call.1} parent=39 // pred_fallthru
          _
      $region40: #{tpu_custom_call.1} parent=5 // pred_fallthru
        _
      %p487 = scmp.le.s32.totalorder 1, %s33
      %p488 = scmp.lt.s32.totalorder %s33, 3
      %p489 = pnand %p487, %p488
      %p490 = pneg %p489
      // Predicated region
      $region53: #{tpu_custom_call.1} parent=5 // pred_check
        _
      $region54: #{tpu_custom_call.1} parent=5 // pred_check_branch
        %492 = sbr.rel (%p489) target = $region56
      $region55: #{tpu_custom_call.1} parent=5 // pred_region
        %s493 = ssub.s32 %s33, 1
        %s494 = sand.u32 %s60, 1
        %s495 = scalar_lea.sflag [#allocation3], %s494
        %s496 = sand.u32 %s60, 1
        %s497 = smul.addr %s496, 4
        %s498 = scalar_lea.vmem [#allocation2], %s497
        // Predicated region
        $region57: #{tpu_custom_call.1} parent=55 // pred_check
          %p499 = pneg %p73
        $region58: #{tpu_custom_call.1} parent=55 // pred_check_branch
          %501 = sbr.rel (%p499) target = $region60
        $region59: #{tpu_custom_call.1} parent=55 // pred_region
          %502 = dma.done %s495, 64
        $region60: #{tpu_custom_call.1} parent=55 // pred_fallthru
          _
        %s503 = sand.u32 %s38, 1
        %s504 = scalar_lea.sflag [#allocation6], %s503
        %s505 = sand.u32 %s88, 1
        %s506 = smul.addr %s505, 4
        %s507 = scalar_lea.vmem [#allocation5], %s506
        // Predicated region
        $region61: #{tpu_custom_call.1} parent=55 // pred_check
          %p508 = pneg %p101
        $region62: #{tpu_custom_call.1} parent=55 // pred_check_branch
          %510 = sbr.rel (%p508) target = $region64
        $region63: #{tpu_custom_call.1} parent=55 // pred_region
          %511 = dma.done %s504, 64
        $region64: #{tpu_custom_call.1} parent=55 // pred_fallthru
          _
        %s512 = sand.u32 %s38, 1
        %s513 = scalar_lea.sflag [#allocation6], %s512
        %s514 = sand.u32 %s116, 1
        %s515 = smul.addr %s514, 4
        %s516 = scalar_lea.vmem [#allocation7], %s515
        // Predicated region
        $region65: #{tpu_custom_call.1} parent=55 // pred_check
          %p517 = pneg %p129
        $region66: #{tpu_custom_call.1} parent=55 // pred_check_branch
          %519 = sbr.rel (%p517) target = $region68
        $region67: #{tpu_custom_call.1} parent=55 // pred_region
          %520 = dma.done %s513, 64
        $region68: #{tpu_custom_call.1} parent=55 // pred_fallthru
          _
        // Predicated region
        $region69: #{tpu_custom_call.1} parent=55 // pred_check
          %p521 = pneg %p150
        $region70: #{tpu_custom_call.1} parent=55 // pred_check_branch
          %523 = sbr.rel (%p521) target = $region72
        $region71: #{tpu_custom_call.1} parent=55 // pred_region
          %524 = dma.done [#allocation9], 256
        $region72: #{tpu_custom_call.1} parent=55 // pred_fallthru
          _
        // Predicated region
        $region73: #{tpu_custom_call.1} parent=55 // pred_check
          %p525 = pneg %p171
        $region74: #{tpu_custom_call.1} parent=55 // pred_check_branch
          %527 = sbr.rel (%p525) target = $region76
        $region75: #{tpu_custom_call.1} parent=55 // pred_region
          %528 = dma.done [#allocation9], 16
        $region76: #{tpu_custom_call.1} parent=55 // pred_fallthru
          _
        // Predicated region
        $region77: #{tpu_custom_call.1} parent=55 // pred_check
          %p529 = pneg %p192
        $region78: #{tpu_custom_call.1} parent=55 // pred_check_branch
          %531 = sbr.rel (%p529) target = $region80
        $region79: #{tpu_custom_call.1} parent=55 // pred_region
          %532 = dma.done [#allocation12], 256
        $region80: #{tpu_custom_call.1} parent=55 // pred_fallthru
          _
        // Predicated region
        $region81: #{tpu_custom_call.1} parent=55 // pred_check
          %p533 = pneg %p213
        $region82: #{tpu_custom_call.1} parent=55 // pred_check_branch
          %535 = sbr.rel (%p533) target = $region84
        $region83: #{tpu_custom_call.1} parent=55 // pred_region
          %536 = dma.done [#allocation12], 16
        $region84: #{tpu_custom_call.1} parent=55 // pred_fallthru
          _
        // Predicated region
        $region85: #{tpu_custom_call.1} parent=55 // pred_check
          %p537 = pneg %p234
        $region86: #{tpu_custom_call.1} parent=55 // pred_check_branch
          %539 = sbr.rel (%p537) target = $region88
        $region87: #{tpu_custom_call.1} parent=55 // pred_region
          %540 = dma.done [#allocation15], 256
        $region88: #{tpu_custom_call.1} parent=55 // pred_fallthru
          _
        // Predicated region
        $region89: #{tpu_custom_call.1} parent=55 // pred_check
          %p541 = pneg %p255
        $region90: #{tpu_custom_call.1} parent=55 // pred_check_branch
          %543 = sbr.rel (%p541) target = $region92
        $region91: #{tpu_custom_call.1} parent=55 // pred_region
          %544 = dma.done [#allocation15], 16
        $region92: #{tpu_custom_call.1} parent=55 // pred_fallthru
          _
        %s545 = sand.u32 %s60, 1
        %s546 = scalar_lea.sflag [#allocation3], %s545
        %s547 = sand.u32 %s60, 1
        %s548 = smul.addr %s547, 4
        %s549 = scalar_lea.vmem [#allocation2], %s548
        %p550 = pneg %p73
        %p551 = pneg %p70
        %s552 = sand.u32 %s38, 1
        %s553 = scalar_lea.sflag [#allocation6], %s552
        %s554 = sand.u32 %s88, 1
        %s555 = smul.addr %s554, 4
        %s556 = scalar_lea.vmem [#allocation5], %s555
        %p557 = pneg %p101
        %p558 = pneg %p98
        %s559 = sand.u32 %s38, 1
        %s560 = scalar_lea.sflag [#allocation6], %s559
        %s561 = sand.u32 %s116, 1
        %s562 = smul.addr %s561, 4
        %s563 = scalar_lea.vmem [#allocation7], %s562
        %p564 = pneg %p129
        %p565 = pneg %p126
        %p566 = pneg %p150
        %p567 = pneg %p147
        %p568 = pneg %p171
        %p569 = pneg %p168
        %p570 = pneg %p192
        %p571 = pneg %p189
        %p572 = pneg %p213
        %p573 = pneg %p210
        %p574 = pneg %p234
        %p575 = pneg %p231
        %p576 = pneg %p255
        %p577 = pneg %p252
        %p578 = pneg %p283
        %p579 = pneg %p280
        %s580 = sand.u32 %s270, 1
        %s581 = scalar_lea.sflag [#allocation4], %s580
        %s582 = sand.u32 %s270, 1
        %s583 = smul.addr %s582, 4
        %s584 = scalar_lea.vmem [#allocation17], %s583
        %p585 = pneg %p311
        %p586 = pneg %p308
        %s587 = sand.u32 %s38, 1
        %s588 = scalar_lea.sflag [#allocation19], %s587
        %s589 = sand.u32 %s298, 1
        %s590 = smul.addr %s589, 4
        %s591 = scalar_lea.vmem [#allocation18], %s590
        %p592 = pneg %p339
        %p593 = pneg %p336
        %s594 = sand.u32 %s38, 1
        %s595 = scalar_lea.sflag [#allocation19], %s594
        %s596 = sand.u32 %s326, 1
        %s597 = smul.addr %s596, 4
        %s598 = scalar_lea.vmem [#allocation20], %s597
        %v600 = vld [vmem:[%s498] sm:$0xf]
        %v601 = vld [vmem:[#allocation8] sm:$0xf]
        %v602 = vld [vmem:[#allocation8 + $0x4] sm:$0xf]
        %v603 = vld [vmem:[#allocation8 + $0x8] sm:$0xf]
        %v604 = vld [vmem:[#allocation8 + $0xc] sm:$0xf]
        %v605 = vld [vmem:[#allocation10] sm:$0x1]
        %v607 = vlaneseq
        %v608 = vshrl.u32 %v607, 7
        %v609 = vsub.s32 0, %v608
        %v610 = vrot.slane %v605, %v609
        %v616 = vunpack.c.l.b16 %v601
        %v617 = vunpack.c.l.b16 %v602
        %v618 = vunpack.c.l.b16 %v603
        %v619 = vunpack.c.l.b16 %v604
        %v620 = vpack.c.b16 %v617, %v616
        %v621 = vpack.c.b16 %v619, %v618
        %vm624 = vcmask 261120
        %v626 = vsel %vm624, %v600, 0
        %628 = vmatprep.subr.bf16.mxu0 0
        %629 = vmatpush1.bf16.msra.mxu0 %v620
        %630 = vmatprep.subr.bf16.mxu0 0
        %631 = vmatpush1.bf16.msra.mxu0 %v621
        %632 = vmatprep.subr.bf16.mxu0 0
        %633 = vmatpush1.bf16.msra.mxu0 0
        %634 = vmatprep.subr.bf16.mxu0 0
        %635 = vmatpush1.bf16.msra.mxu0 0
        %636 = vmatprep.subr.bf16.mxu0 0
        %637 = vmatpush1.bf16.msra.mxu0 0
        %638 = vmatprep.subr.bf16.mxu0 0
        %639 = vmatpush1.bf16.msra.mxu0 0
        %640 = vmatprep.subr.bf16.mxu0 0
        %641 = vmatpush1.bf16.msra.mxu0 0
        %642 = vmatprep.subr.bf16.mxu0 0
        %643 = vmatpush1.bf16.msra.mxu0 0
        %644 = vmatprep.subr.bf16.mxu0 0
        %645 = vmatpush1.bf16.msra.mxu0 0
        %646 = vmatprep.subr.bf16.mxu0 0
        %647 = vmatpush1.bf16.msra.mxu0 0
        %648 = vmatprep.subr.bf16.mxu0 0
        %649 = vmatpush1.bf16.msra.mxu0 0
        %650 = vmatprep.subr.bf16.mxu0 0
        %651 = vmatpush1.bf16.msra.mxu0 0
        %652 = vmatprep.subr.bf16.mxu0 0
        %653 = vmatpush1.bf16.msra.mxu0 0
        %654 = vmatprep.subr.bf16.mxu0 0
        %655 = vmatpush1.bf16.msra.mxu0 0
        %656 = vmatprep.subr.bf16.mxu0 0
        %657 = vmatpush1.bf16.msra.mxu0 0
        %658 = vmatprep.subr.bf16.mxu0 0
        %659 = vmatpush1.bf16.msra.mxu0 0
        %660 = vmatprep.mubr.bf16.mxu0 0
        %661 = vmatmul.mubr.bf16.gmra.mrb[0].mxu0 %v626
        %v662 = vpop.f32.mrb[0].mxu0
        %v663 = vadd.f32 %v610, %v662
        %v664 = vpop.f32.mrb[0].mxu0
        %v665 = vpop.f32.mrb[0].mxu0
        %v666 = vpop.f32.mrb[0].mxu0
        %667 = vdwg.mxu0
        %v668 = vpack.c.bf16 %v663, %v663
        %vm669 = vcmask 257024
        %670 = vst.msk [vmem:[%s584] sm:$0xf] %vm669, %v668
        %v671 = vld [vmem:[%s507] sm:$0xf]
        %v672 = vld [vmem:[#allocation11] sm:$0xf]
        %v673 = vld [vmem:[#allocation11 + $0x4] sm:$0xf]
        %v674 = vld [vmem:[#allocation11 + $0x8] sm:$0xf]
        %v675 = vld [vmem:[#allocation11 + $0xc] sm:$0xf]
        %v676 = vld [vmem:[#allocation13] sm:$0x1]
        %v678 = vlaneseq
        %v679 = vshrl.u32 %v678, 7
        %v680 = vsub.s32 0, %v679
        %v681 = vrot.slane %v676, %v680
        %v687 = vunpack.c.l.b16 %v672
        %v688 = vunpack.c.l.b16 %v673
        %v689 = vunpack.c.l.b16 %v674
        %v690 = vunpack.c.l.b16 %v675
        %v691 = vpack.c.b16 %v688, %v687
        %v692 = vpack.c.b16 %v690, %v689
        %v696 = vsel %vm624, %v671, 0
        %698 = vmatprep.subr.bf16.mxu0 0
        %699 = vmatpush1.bf16.msra.mxu0 %v691
        %700 = vmatprep.subr.bf16.mxu0 0
        %701 = vmatpush1.bf16.msra.mxu0 %v692
        %702 = vmatprep.subr.bf16.mxu0 0
        %703 = vmatpush1.bf16.msra.mxu0 0
        %704 = vmatprep.subr.bf16.mxu0 0
        %705 = vmatpush1.bf16.msra.mxu0 0
        %706 = vmatprep.subr.bf16.mxu0 0
        %707 = vmatpush1.bf16.msra.mxu0 0
        %708 = vmatprep.subr.bf16.mxu0 0
        %709 = vmatpush1.bf16.msra.mxu0 0
        %710 = vmatprep.subr.bf16.mxu0 0
        %711 = vmatpush1.bf16.msra.mxu0 0
        %712 = vmatprep.subr.bf16.mxu0 0
        %713 = vmatpush1.bf16.msra.mxu0 0
        %714 = vmatprep.subr.bf16.mxu0 0
        %715 = vmatpush1.bf16.msra.mxu0 0
        %716 = vmatprep.subr.bf16.mxu0 0
        %717 = vmatpush1.bf16.msra.mxu0 0
        %718 = vmatprep.subr.bf16.mxu0 0
        %719 = vmatpush1.bf16.msra.mxu0 0
        %720 = vmatprep.subr.bf16.mxu0 0
        %721 = vmatpush1.bf16.msra.mxu0 0
        %722 = vmatprep.subr.bf16.mxu0 0
        %723 = vmatpush1.bf16.msra.mxu0 0
        %724 = vmatprep.subr.bf16.mxu0 0
        %725 = vmatpush1.bf16.msra.mxu0 0
        %726 = vmatprep.subr.bf16.mxu0 0
        %727 = vmatpush1.bf16.msra.mxu0 0
        %728 = vmatprep.subr.bf16.mxu0 0
        %729 = vmatpush1.bf16.msra.mxu0 0
        %730 = vmatprep.mubr.bf16.mxu0 0
        %731 = vmatmul.mubr.bf16.gmra.mrb[0].mxu0 %v696
        %v732 = vpop.f32.mrb[0].mxu0
        %v733 = vadd.f32 %v681, %v732
        %v734 = vpop.f32.mrb[0].mxu0
        %v735 = vpop.f32.mrb[0].mxu0
        %v736 = vpop.f32.mrb[0].mxu0
        %737 = vdwg.mxu0
        %v738 = vpack.c.bf16 %v733, %v733
        %739 = vst.msk [vmem:[%s591] sm:$0xf] %vm669, %v738
        %v740 = vld [vmem:[%s516] sm:$0xf]
        %v741 = vld [vmem:[#allocation14] sm:$0xf]
        %v742 = vld [vmem:[#allocation14 + $0x4] sm:$0xf]
        %v743 = vld [vmem:[#allocation14 + $0x8] sm:$0xf]
        %v744 = vld [vmem:[#allocation14 + $0xc] sm:$0xf]
        %v745 = vld [vmem:[#allocation16] sm:$0x1]
        %v747 = vlaneseq
        %v748 = vshrl.u32 %v747, 7
        %v749 = vsub.s32 0, %v748
        %v750 = vrot.slane %v745, %v749
        %v756 = vunpack.c.l.b16 %v741
        %v757 = vunpack.c.l.b16 %v742
        %v758 = vunpack.c.l.b16 %v743
        %v759 = vunpack.c.l.b16 %v744
        %v760 = vpack.c.b16 %v757, %v756
        %v761 = vpack.c.b16 %v759, %v758
        %v765 = vsel %vm624, %v740, 0
        %767 = vmatprep.subr.bf16.mxu0 0
        %768 = vmatpush1.bf16.msra.mxu0 %v760
        %769 = vmatprep.subr.bf16.mxu0 0
        %770 = vmatpush1.bf16.msra.mxu0 %v761
        %771 = vmatprep.subr.bf16.mxu0 0
        %772 = vmatpush1.bf16.msra.mxu0 0
        %773 = vmatprep.subr.bf16.mxu0 0
        %774 = vmatpush1.bf16.msra.mxu0 0
        %775 = vmatprep.subr.bf16.mxu0 0
        %776 = vmatpush1.bf16.msra.mxu0 0
        %777 = vmatprep.subr.bf16.mxu0 0
        %778 = vmatpush1.bf16.msra.mxu0 0
        %779 = vmatprep.subr.bf16.mxu0 0
        %780 = vmatpush1.bf16.msra.mxu0 0
        %781 = vmatprep.subr.bf16.mxu0 0
        %782 = vmatpush1.bf16.msra.mxu0 0
        %783 = vmatprep.subr.bf16.mxu0 0
        %784 = vmatpush1.bf16.msra.mxu0 0
        %785 = vmatprep.subr.bf16.mxu0 0
        %786 = vmatpush1.bf16.msra.mxu0 0
        %787 = vmatprep.subr.bf16.mxu0 0
        %788 = vmatpush1.bf16.msra.mxu0 0
        %789 = vmatprep.subr.bf16.mxu0 0
        %790 = vmatpush1.bf16.msra.mxu0 0
        %791 = vmatprep.subr.bf16.mxu0 0
        %792 = vmatpush1.bf16.msra.mxu0 0
        %793 = vmatprep.subr.bf16.mxu0 0
        %794 = vmatpush1.bf16.msra.mxu0 0
        %795 = vmatprep.subr.bf16.mxu0 0
        %796 = vmatpush1.bf16.msra.mxu0 0
        %797 = vmatprep.subr.bf16.mxu0 0
        %798 = vmatpush1.bf16.msra.mxu0 0
        %799 = vmatprep.mubr.bf16.mxu0 0
        %800 = vmatmul.mubr.bf16.gmra.mrb[0].mxu0 %v765
        %v801 = vpop.f32.mrb[0].mxu0
        %v802 = vadd.f32 %v750, %v801
        %v803 = vpop.f32.mrb[0].mxu0
        %v804 = vpop.f32.mrb[0].mxu0
        %v805 = vpop.f32.mrb[0].mxu0
        %806 = vdwg.mxu0
        %v807 = vpack.c.bf16 %v802, %v802
        %808 = vst.msk [vmem:[%s598] sm:$0xf] %vm669, %v807
        %s809 = sand.u32 %s270, 1
        %s810 = scalar_lea.sflag [#allocation4], %s809
        %s811 = sand.u32 %s270, 1
        %s812 = smul.addr %s811, 4
        %s813 = scalar_lea.vmem [#allocation17], %s812
        %s814 = sand.u32 %s38, 1
        %s815 = scalar_lea.sflag [#allocation19], %s814
        %s816 = sand.u32 %s298, 1
        %s817 = smul.addr %s816, 4
        %s818 = scalar_lea.vmem [#allocation18], %s817
        %s819 = sand.u32 %s38, 1
        %s820 = scalar_lea.sflag [#allocation19], %s819
        %s821 = sand.u32 %s326, 1
        %s822 = smul.addr %s821, 4
        %s823 = scalar_lea.vmem [#allocation20], %s822
        // Predicated region
        $region93: #{tpu_custom_call.1} parent=55 // pred_check
          %p824 = pneg %p280
        $region94: #{tpu_custom_call.1} parent=55 // pred_check_branch
          %826 = sbr.rel (%p824) target = $region96
        $region95: #{tpu_custom_call.1} parent=55 // pred_region
          %s828 = ssub.s32 64, 64
          %829 = vsyncadd %s810, %s828
          %s830 = sadd.s32 %s43, %s42
          %s831 = smul.addr %s830, 64
          %s832 = scalar_lea.hbm %s9, %s831
          %s834 = sshll.u32 %s813, 4
          %s835 = int_to_ptr.vmem [resolvable:$true] %s834
          %837 = dma.vmem_to_hbm [thread:$0]  %s835, 64, %s832, %s810
        $region96: #{tpu_custom_call.1} parent=55 // pred_fallthru
          _
        // Predicated region
        $region97: #{tpu_custom_call.1} parent=55 // pred_check
          %p838 = pneg %p308
        $region98: #{tpu_custom_call.1} parent=55 // pred_check_branch
          %840 = sbr.rel (%p838) target = $region100
        $region99: #{tpu_custom_call.1} parent=55 // pred_region
          %s842 = ssub.s32 64, 64
          %843 = vsyncadd %s815, %s842
          %s844 = sadd.s32 %s43, %s42
          %s845 = smul.addr %s844, 64
          %s846 = scalar_lea.hbm %s10, %s845
          %s848 = sshll.u32 %s818, 4
          %s849 = int_to_ptr.vmem [resolvable:$true] %s848
          %851 = dma.vmem_to_hbm [thread:$0]  %s849, 64, %s846, %s815
        $region100: #{tpu_custom_call.1} parent=55 // pred_fallthru
          _
        // Predicated region
        $region101: #{tpu_custom_call.1} parent=55 // pred_check
          %p852 = pneg %p336
        $region102: #{tpu_custom_call.1} parent=55 // pred_check_branch
          %854 = sbr.rel (%p852) target = $region104
        $region103: #{tpu_custom_call.1} parent=55 // pred_region
          %s856 = ssub.s32 64, 64
          %857 = vsyncadd %s820, %s856
          %s858 = sadd.s32 %s43, %s42
          %s859 = smul.addr %s858, 64
          %s860 = scalar_lea.hbm %s11, %s859
          %s862 = sshll.u32 %s823, 4
          %s863 = int_to_ptr.vmem [resolvable:$true] %s862
          %865 = dma.vmem_to_hbm [thread:$0]  %s863, 64, %s860, %s820
        $region104: #{tpu_custom_call.1} parent=55 // pred_fallthru
          _
      $region56: #{tpu_custom_call.1} parent=5 // pred_fallthru
        _
      %p866 = scmp.le.s32.totalorder 2, %s33
      // Predicated region
      $region105: #{tpu_custom_call.1} parent=5 // pred_check
        %p867 = pneg %p866
      $region106: #{tpu_custom_call.1} parent=5 // pred_check_branch
        %869 = sbr.rel (%p867) target = $region108
      $region107: #{tpu_custom_call.1} parent=5 // pred_region
        %s870 = ssub.s32 %s33, 2
        // Predicated region
        $region109: #{tpu_custom_call.1} parent=107 // pred_check
          %p871 = pneg %p286
        $region110: #{tpu_custom_call.1} parent=107 // pred_check_branch
          %873 = sbr.rel (%p871) target = $region112
        $region111: #{tpu_custom_call.1} parent=107 // pred_region
          %s874 = sand.u32 %s271, 1
          %s875 = scalar_lea.sflag [#allocation4], %s874
          %s876 = sand.u32 %s271, 1
          %s877 = smul.addr %s876, 4
          %s878 = scalar_lea.vmem [#allocation17], %s877
          %879 = dma.done %s875, 64
        $region112: #{tpu_custom_call.1} parent=107 // pred_fallthru
          _
        // Predicated region
        $region113: #{tpu_custom_call.1} parent=107 // pred_check
          %p880 = pneg %p314
        $region114: #{tpu_custom_call.1} parent=107 // pred_check_branch
          %882 = sbr.rel (%p880) target = $region116
        $region115: #{tpu_custom_call.1} parent=107 // pred_region
          %s883 = sand.u32 %s39, 1
          %s884 = scalar_lea.sflag [#allocation19], %s883
          %s885 = sand.u32 %s299, 1
          %s886 = smul.addr %s885, 4
          %s887 = scalar_lea.vmem [#allocation18], %s886
          %888 = dma.done %s884, 64
        $region116: #{tpu_custom_call.1} parent=107 // pred_fallthru
          _
        // Predicated region
        $region117: #{tpu_custom_call.1} parent=107 // pred_check
          %p889 = pneg %p342
        $region118: #{tpu_custom_call.1} parent=107 // pred_check_branch
          %891 = sbr.rel (%p889) target = $region120
        $region119: #{tpu_custom_call.1} parent=107 // pred_region
          %s892 = sand.u32 %s39, 1
          %s893 = scalar_lea.sflag [#allocation19], %s892
          %s894 = sand.u32 %s327, 1
          %s895 = smul.addr %s894, 4
          %s896 = scalar_lea.vmem [#allocation20], %s895
          %897 = dma.done %s893, 64
        $region120: #{tpu_custom_call.1} parent=107 // pred_fallthru
          _
      $region108: #{tpu_custom_call.1} parent=5 // pred_fallthru
        _
    $region6: #{tpu_custom_call.1} parent=1 // loop_footer
      %s37 = sadd.s32 1, %s33
    $region7: #{tpu_custom_call.1} parent=1 // loop_footer_branch
      %32 = sbr.rel target = $region3
    $region8: #{tpu_custom_call.1} parent=1 // loop_exit
      _
    %898 = vsyncpa [#allocation3], 1
    %s899 = scalar_lea.sflag [#allocation3], 1
    %900 = vsyncpa %s899, 1
    %901 = vsyncpa [#allocation6], 1
    %s902 = scalar_lea.sflag [#allocation6], 1
    %903 = vsyncpa %s902, 1
    %904 = vsyncpa [#allocation9], 1
    %905 = vsyncpa [#allocation12], 1
    %906 = vsyncpa [#allocation15], 1
    %907 = vsyncpa [#allocation4], 1
    %s908 = scalar_lea.sflag [#allocation4], 1
    %909 = vsyncpa %s908, 1
    %910 = vsyncpa [#allocation19], 1
    %s911 = scalar_lea.sflag [#allocation19], 1
    %912 = vsyncpa %s911, 1

</llo_original>
